<compile_context>
chip_gen: v5e
topology: v5e:2x2
jax: 0.10.0
libtpu: 0.0.40
codegen_flags: <defaults>
</compile_context>

<pallas_src>
import functools
import math

import jax
import jax.numpy as jnp
from jax.experimental import pallas as pl
from jax.experimental.pallas import tpu as pltpu


def make_pos_embedding(emb_size: int, maxlen: int = 5000,
                       dtype=jnp.float32) -> jnp.ndarray:
    """Replicates PositionalEncoding.__init__ buffer: (maxlen, 1, emb_size)."""
    assert emb_size % 2 == 0, "emb_size must be even (matches the PyTorch module)"
    den = jnp.exp(-jnp.arange(0, emb_size, 2, dtype=jnp.float32)
                  * (math.log(10000.0) / emb_size))            # (emb_size//2,)
    pos = jnp.arange(0, maxlen, dtype=jnp.float32)[:, None]    # (maxlen, 1)
    angles = pos * den[None, :]                                 # (maxlen, emb//2)
    pe = jnp.zeros((maxlen, emb_size), dtype=jnp.float32)
    pe = pe.at[:, 0::2].set(jnp.sin(angles))
    pe = pe.at[:, 1::2].set(jnp.cos(angles))
    return pe[:, None, :].astype(dtype)                         # (maxlen, 1, emb)


def _round_down(x: int, m: int) -> int:
    return (x // m) * m


def _round_up(x: int, m: int) -> int:
    return ((x + m - 1) // m) * m


def _pos_enc_kernel_flat(tok_ref, pos_ref, out_ref, *, batch: int):
    # tok_ref/out_ref: (ts, B*E); pos_ref: (ts, E).
    pos = pos_ref[...].astype(out_ref.dtype)
    if batch > 1:
        # Lane-replicate the pos row across the B packed copies of E.
        pos = jnp.tile(pos, (1, batch))                          # (ts, B*E)
    out_ref[...] = tok_ref[...].astype(out_ref.dtype) + pos


def _pos_enc_kernel_3d(tok_ref, pos_ref, out_ref):
    # tok_ref/out_ref: (ts, tb, E); pos_ref: (ts, E) broadcast over batch.
    pos = pos_ref[...].astype(out_ref.dtype)[:, None, :]         # (ts, 1, E)
    out_ref[...] = tok_ref[...].astype(out_ref.dtype) + pos


def positional_encoding(tokens: jnp.ndarray,
                        pos_embedding: jnp.ndarray,
                        *,
                        target_tile_bytes: int = 4 * 1024 * 1024) -> jnp.ndarray:
    """tokens: (S, B, E); pos_embedding: (maxlen, 1, E); returns (S, B, E)."""
    S, B, E = tokens.shape
    maxlen, one, e2 = pos_embedding.shape
    assert maxlen >= S and one == 1 and e2 == E
    assert E % 2 == 0

    # Match PyTorch promotion (bf16 tokens + f32 buffer -> f32 output).
    out_dtype = jnp.promote_types(tokens.dtype, pos_embedding.dtype)
    # Slice BEFORE casting: only S rows of the (maxlen, 1, E) buffer are touched.
    pos = pos_embedding[:S, 0, :].astype(out_dtype)              # (S, E), 2-D

    tok_item = jnp.dtype(tokens.dtype).itemsize
    out_item = jnp.dtype(out_dtype).itemsize
    item = max(tok_item, out_item)

    # Small-batch path: pack B into lanes so sublanes are fully occupied and
    # stores are unmasked.  Requires an 8-row (sublane) seq tile to fit budget.
    flat = (B < 8) and (8 * B * E * item <= target_tile_bytes)

    if flat:
        tb = B
    else:
        if B * E * item <= target_tile_bytes:
            tb = B                                               # no batch tiling
        else:
            # Bound the working set for large B*E: tile B in multiples of 8 so
            # an 8-row seq tile stays around the target.
            tb = min(B, max(8, _round_down(target_tile_bytes // (8 * E * item), 8)))

    # Sequence tile: as many rows as fit the target, >=2 grid steps when S
    # allows (v7x megacore), multiple of 8 (sublane rule for the 2-D blocks).
    row_bytes = tb * E * item
    ts = max(1, target_tile_bytes // max(1, row_bytes))
    ts = min(ts, S)
    if S >= 16:
        ts = min(ts, _round_up(pl.cdiv(S, 2), 8))
    if ts < S:
        ts = max(8, _round_down(ts, 8))
        ts = min(ts, S)

    # VMEM budget: double-buffered tok-in + out + pos tiles, plus headroom.
    tok_tile = ts * tb * E * tok_item
    out_tile = ts * tb * E * out_item
    pos_tile = max(8, ts) * E * out_item
    need = 2 * (tok_tile + out_tile + pos_tile) + (4 << 20)
    vmem_limit = int(min(48 << 20, max(32 << 20, need)))         # safe on v5e/v6e/v7x

    if flat:
        tokens_flat = tokens.reshape(S, B * E)                   # free, contiguous
        out_flat = pl.pallas_call(
            functools.partial(_pos_enc_kernel_flat, batch=B),
            out_shape=jax.ShapeDtypeStruct((S, B * E), out_dtype),
            grid_spec=pltpu.PrefetchScalarGridSpec(
                num_scalar_prefetch=0,
                grid=(pl.cdiv(S, ts),),
                in_specs=[
                    pl.BlockSpec((ts, B * E), lambda i: (i, 0)),
                    pl.BlockSpec((ts, E), lambda i: (i, 0)),
                ],
                out_specs=pl.BlockSpec((ts, B * E), lambda i: (i, 0)),
            ),
            compiler_params=pltpu.CompilerParams(
                dimension_semantics=("parallel",),
                vmem_limit_bytes=vmem_limit,
            ),
        )(tokens_flat, pos)
        return out_flat.reshape(S, B, E)

    grid = (pl.cdiv(S, ts), pl.cdiv(B, tb))
    return pl.pallas_call(
        _pos_enc_kernel_3d,
        out_shape=jax.ShapeDtypeStruct((S, B, E), out_dtype),
        grid_spec=pltpu.PrefetchScalarGridSpec(
            num_scalar_prefetch=0,
            grid=grid,
            in_specs=[
                pl.BlockSpec((ts, tb, E), lambda i, j: (i, j, 0)),
                pl.BlockSpec((ts, E), lambda i, j: (i, 0)),
            ],
            out_specs=pl.BlockSpec((ts, tb, E), lambda i, j: (i, j, 0)),
        ),
        compiler_params=pltpu.CompilerParams(
            dimension_semantics=("parallel", "parallel"),
            vmem_limit_bytes=vmem_limit,
        ),
    )(tokens, pos)


if __name__ == "__main__":
    key = jax.random.PRNGKey(0)

    # --- main check: small batch -> flat (S, B*E) path, lane/sublane dense ---
    SEQ, BATCH, EMB, MAXLEN = 8, 2, 128, 64
    tokens = jax.random.normal(key, (SEQ, BATCH, EMB), dtype=jnp.float32)
    pos_embedding = make_pos_embedding(EMB, MAXLEN)

    out = jax.block_until_ready(positional_encoding(tokens, pos_embedding))
    ref = tokens + pos_embedding[:SEQ]
    assert out.shape == (SEQ, BATCH, EMB) and out.dtype == ref.dtype
    assert jnp.allclose(out, ref, atol=1e-6), "mismatch vs reference (main)"

    # --- multi-tile flat check: small target -> 3 grid steps, partial last ---
    SEQ2 = 20
    tokens2 = jax.random.normal(jax.random.PRNGKey(1), (SEQ2, BATCH, EMB),
                                dtype=jnp.float32)
    out2 = jax.block_until_ready(
        positional_encoding(tokens2, pos_embedding,
                            target_tile_bytes=8 * BATCH * EMB * 4))  # ts = 8
    ref2 = tokens2 + pos_embedding[:SEQ2]
    assert jnp.allclose(out2, ref2, atol=1e-6), "mismatch vs reference (multi-tile)"

    # --- 3-D path check: B >= 8 keeps (ts, tb, E) blocks + 2-D pos broadcast ---
    SEQ3, BATCH3 = 24, 16
    tokens3 = jax.random.normal(jax.random.PRNGKey(2), (SEQ3, BATCH3, EMB),
                                dtype=jnp.float32)
    out3 = jax.block_until_ready(positional_encoding(tokens3, pos_embedding))
    ref3 = tokens3 + pos_embedding[:SEQ3]
    assert jnp.allclose(out3, ref3, atol=1e-6), "mismatch vs reference (3d)"

    # --- bf16 check: matches PyTorch promotion (bf16 tokens + f32 buf -> f32) ---
    tokens4 = tokens.astype(jnp.bfloat16)
    out4 = jax.block_until_ready(positional_encoding(tokens4, pos_embedding))
    ref4 = tokens4.astype(jnp.float32) + pos_embedding[:SEQ]
    assert out4.dtype == jnp.float32
    assert jnp.allclose(out4, ref4, atol=1e-6), "mismatch vs reference (bf16)"

    print("KERNEL_OK")
</pallas_src>

<mosaic_0001>
module attributes {stable_mosaic.version = 11 : i64} {
  func.func @_pos_enc_kernel_flat(%arg0: i32, %arg1: memref<8x256xf32, #tpu.memory_space<vmem>>, %arg2: memref<8x128xf32, #tpu.memory_space<vmem>>, %arg3: memref<8x256xf32, #tpu.memory_space<vmem>>) attributes {dimension_semantics = [#tpu.dimension_semantics<parallel>], iteration_bounds = array<i64: 1>, scalar_prefetch = 0 : i64, scratch_operands = 0 : i64, tpu.core_type = #tpu.core_type<tc>, window_params = [{transform_indices = @transform_0, window_bounds = array<i64: 8, 256>}, {transform_indices = @transform_1, window_bounds = array<i64: 8, 128>}, {transform_indices = @transform_2, window_bounds = array<i64: 8, 256>}]} {
    %c0 = arith.constant 0 : index
    %c0_0 = arith.constant 0 : index
    %0 = vector.load %arg2[%c0, %c0_0] : memref<8x128xf32, #tpu.memory_space<vmem>>, vector<8x128xf32>
    %1 = tpu.concatenate %0, %0 in 1 : vector<8x128xf32>, vector<8x128xf32> -> vector<8x256xf32>
    %c0_1 = arith.constant 0 : index
    %c0_2 = arith.constant 0 : index
    %2 = vector.load %arg1[%c0_1, %c0_2] : memref<8x256xf32, #tpu.memory_space<vmem>>, vector<8x256xf32>
    %3 = arith.addf %2, %1 : vector<8x256xf32>
    %c0_3 = arith.constant 0 : index
    %c0_4 = arith.constant 0 : index
    %4 = vector.load %arg3[%c0_3, %c0_4] : memref<8x256xf32, #tpu.memory_space<vmem>>, vector<8x256xf32>
    tpu.vector_store %arg3[%c0_3, %c0_4], %3 {strides = array<i32>} : memref<8x256xf32, #tpu.memory_space<vmem>>, vector<8x256xf32>,
    return
  }
  func.func @transform_0(%arg0: i32) -> (i32, i32) {
    %c0_i32 = arith.constant 0 : i32
    %c0_i32_0 = arith.constant 0 : i32
    return %arg0, %c0_i32 : i32, i32
  }
  func.func @transform_1(%arg0: i32) -> (i32, i32) {
    %c0_i32 = arith.constant 0 : i32
    %c0_i32_0 = arith.constant 0 : i32
    return %arg0, %c0_i32 : i32, i32
  }
  func.func @transform_2(%arg0: i32) -> (i32, i32) {
    %c0_i32 = arith.constant 0 : i32
    %c0_i32_0 = arith.constant 0 : i32
    return %arg0, %c0_i32 : i32, i32
  }
}

</mosaic_0001>

<llo_original>
// kernel: tpu_custom_call.1
$region0: #{tpu_custom_call.1}
  #allocation0 [shape = 'u32[]', space=smem, size = 0x4, offset = 0x4, fixed_abs, tag = 'smem constant byte address 0x4 - core index']
  #allocation1 [shape = 'u32[72,128]{1,0:T(1,128)}', space=vmem, size = 0x9000, scoped, tag = 'internal scratch']
  %s0 = inlined_call_operand.hbm [shape: f32[8,256], index: 0, kind: input, shape index: {}]
  %s1 = inlined_call_operand.hbm [shape: f32[8,128], index: 1, kind: input, shape index: {}]
  %s2 = inlined_call_operand.hbm [shape: f32[8,256], index: 2, kind: output, shape index: {}]
  %s3 = sld [smem:[#allocation0]]
  $region26: #{tpu_custom_call.1} parent=0
    _
  %s5 = ssub.s32 1, %s3
  %s6 = scalar_select 0, %s5, %s3
  $region1: #{tpu_custom_call.1} parent=0
    #allocation2 [shape = 'u8[8192]{0}', space=vmem, size = 0x2000, scoped, tag = 'input window, operand 0, single buffered']
    #allocation3 [shape = 's32[1]{0}', space=sflag, size = 0x4, scoped, tag = 'scoped memory for tpu_custom_call.1']
    #allocation4 [shape = 's32[1]{0}', space=sflag, size = 0x4, scoped, tag = 'scoped memory for tpu_custom_call.1']
    #allocation5 [shape = 'u8[4096]{0}', space=vmem, size = 0x1000, scoped, tag = 'input window, operand 1, single buffered']
    #allocation6 [shape = 's32[1]{0}', space=sflag, size = 0x4, scoped, tag = 'scoped memory for tpu_custom_call.1']
    #allocation7 [shape = 'u8[8192]{0}', space=vmem, size = 0x2000, scoped, tag = 'output window, operand 0, single buffered']
    %7 = vsyncpa [#allocation3], 0
    %8 = vsyncpa [#allocation6], 0
    %9 = vsyncpa [#allocation4], 0
    // Predicated region
    $region2: #{tpu_custom_call.1} parent=1 // pred_check
      _
    $region3: #{tpu_custom_call.1} parent=1 // pred_check_branch
      %11 = sbr.rel (0) target = $region5
    $region4: #{tpu_custom_call.1} parent=1 // pred_region
      %13 = vsyncadd [#allocation3], 0
      %s15 = sshll.u32 %s0, 4
      %s16 = int_to_ptr.hbm [resolvable:$true] %s15
      %s17 = sshll.u32 [#allocation2], 4
      %s18 = int_to_ptr.vmem [resolvable:$true] %s17
      %20 = dma.hbm_to_vmem [thread:$0]  %s16, 256, %s18, [#allocation3]
    $region5: #{tpu_custom_call.1} parent=1 // pred_fallthru
      _
    // Predicated region
    $region6: #{tpu_custom_call.1} parent=1 // pred_check
      _
    $region7: #{tpu_custom_call.1} parent=1 // pred_check_branch
      %22 = sbr.rel (0) target = $region9
    $region8: #{tpu_custom_call.1} parent=1 // pred_region
      %24 = vsyncadd [#allocation6], 0
      %s26 = sshll.u32 %s1, 4
      %s27 = int_to_ptr.hbm [resolvable:$true] %s26
      %s28 = sshll.u32 [#allocation5], 4
      %s29 = int_to_ptr.vmem [resolvable:$true] %s28
      %31 = dma.hbm_to_vmem [thread:$0]  %s27, 128, %s29, [#allocation6]
    $region9: #{tpu_custom_call.1} parent=1 // pred_fallthru
      _
    // Predicated region
    $region10: #{tpu_custom_call.1} parent=1 // pred_check
      _
    $region11: #{tpu_custom_call.1} parent=1 // pred_check_branch
      %33 = sbr.rel (0) target = $region13
    $region12: #{tpu_custom_call.1} parent=1 // pred_region
      %35 = dma.done [#allocation3], 256
    $region13: #{tpu_custom_call.1} parent=1 // pred_fallthru
      _
    // Predicated region
    $region14: #{tpu_custom_call.1} parent=1 // pred_check
      _
    $region15: #{tpu_custom_call.1} parent=1 // pred_check_branch
      %37 = sbr.rel (0) target = $region17
    $region16: #{tpu_custom_call.1} parent=1 // pred_region
      %39 = dma.done [#allocation6], 128
    $region17: #{tpu_custom_call.1} parent=1 // pred_fallthru
      _
    %v40 = vld [vmem:[#allocation5] sm:$0xff]
    %v41 = vld [vmem:[#allocation2] sm:$0xff]
    %v42 = vld [vmem:[#allocation2 + $0x8] sm:$0xff]
    %v43 = vadd.f32 %v41, %v40
    %v44 = vadd.f32 %v42, %v40
    %45 = vst [vmem:[#allocation7] sm:$0xff] %v43
    %46 = vst [vmem:[#allocation7 + $0x8] sm:$0xff] %v44
    // Predicated region
    $region18: #{tpu_custom_call.1} parent=1 // pred_check
      _
    $region19: #{tpu_custom_call.1} parent=1 // pred_check_branch
      %48 = sbr.rel (0) target = $region21
    $region20: #{tpu_custom_call.1} parent=1 // pred_region
      %50 = vsyncadd [#allocation4], 0
      %s52 = sshll.u32 [#allocation7], 4
      %s53 = int_to_ptr.vmem [resolvable:$true] %s52
      %s54 = sshll.u32 %s2, 4
      %s55 = int_to_ptr.hbm [resolvable:$true] %s54
      %57 = dma.vmem_to_hbm [thread:$0]  %s53, 256, %s55, [#allocation4]
    $region21: #{tpu_custom_call.1} parent=1 // pred_fallthru
      _
    // Predicated region
    $region22: #{tpu_custom_call.1} parent=1 // pred_check
      _
    $region23: #{tpu_custom_call.1} parent=1 // pred_check_branch
      %59 = sbr.rel (0) target = $region25
    $region24: #{tpu_custom_call.1} parent=1 // pred_region
      %61 = dma.done [#allocation4], 256
    $region25: #{tpu_custom_call.1} parent=1 // pred_fallthru
      _
    %62 = vsyncpa [#allocation3], 1
    %63 = vsyncpa [#allocation6], 1
    %64 = vsyncpa [#allocation4], 1

</llo_original>
